<compile_context>
chip_gen: v5e
topology: v5e:2x2
jax: 0.10.0
libtpu: 0.0.40
codegen_flags: <defaults>
</compile_context>

<pallas_src>
import functools
import math

import jax
import jax.numpy as jnp
from jax.experimental import pallas as pl
from jax.experimental.pallas import tpu as pltpu


def _lmn_kernel(xh_ref, m0_ref, wmcat_ref, whm_t_ref, bm_ref, out_ref,
                m_scratch, stage_ref, *, time_block, hidden, mem, bb):
    t_blk = pl.program_id(1)

    @pl.when(t_blk == 0)
    def _():
        m_scratch[...] = m0_ref[...].astype(jnp.float32)

    m = m_scratch[...]                                   # (bb, M) f32 carry
    wmcat = wmcat_ref[...]                               # (M, H+M) = [Wmh^T | Wmm^T]
    whm_t = whm_t_ref[...]                               # (H, M)
    bm = jnp.broadcast_to(bm_ref[...], (bb, mem))        # broadcast hoisted out of loop

    # Statically unrolled inner time loop (time_block is small and compile-time).
    for i in range(time_block):
        # One fused MXU op for both recurrent projections of m_{t-1}.
        mcat = jnp.dot(m, wmcat, preferred_element_type=jnp.float32)   # (bb, H+M)
        h = jnp.tanh(xh_ref[i] + mcat[:, :hidden])                      # xh has bh folded in
        m = (jnp.dot(h, whm_t, preferred_element_type=jnp.float32)
             + mcat[:, hidden:] + bm)
        # Cheap VMEM staging store (lane-dense slab assembled here).
        stage_ref[:, i * mem:(i + 1) * mem] = m

    m_scratch[...] = m
    # Single lane-dense store of the whole time block to HBM.
    out_ref[0] = stage_ref[...].astype(out_ref.dtype)


def lmn_layer_forward(x, m_prev, params, *, time_block=8, batch_block=None,
                      weight_dtype=jnp.float32):
    """LMNLayer forward.  x: (T, B, in_size) f32, m_prev: (B, memory_size) f32.

    Returns (stacked memory states (T, B, M), final memory (B, M)).
    """
    T, B, in_size = x.shape
    M = m_prev.shape[1]
    H = params["Wxh"].shape[0]

    if batch_block is None:
        batch_block = B
    assert B % batch_block == 0, "batch_block must divide B"
    bb = batch_block

    # ---- Prologue (plain XLA glue, off the recurrent critical path) --------
    # One batched input projection for all T*B rows; bh folded in.
    xh = (x.reshape(T * B, in_size).astype(jnp.float32)
          @ params["Wxh"].T.astype(jnp.float32)
          + params["bh"].astype(jnp.float32)).reshape(T, B, H).astype(weight_dtype)

    # Pad time up to a multiple of time_block.  Padded steps are computed but
    # their outputs are discarded; steps < T are unaffected (causal recurrence).
    num_t_blocks = pl.cdiv(T, time_block)
    T_pad = num_t_blocks * time_block
    if T_pad != T:
        xh = jnp.concatenate(
            [xh, jnp.zeros((T_pad - T, B, H), xh.dtype)], axis=0)

    # Fused recurrent weights: one (M, H+M) matrix -> one MXU op per step.
    wm_cat = jnp.concatenate(
        [params["Wmh"].T, params["Wmm"].T], axis=1).astype(weight_dtype)   # (M, H+M)
    whm_t = params["Whm"].T.astype(weight_dtype)                            # (H, M)
    bm = params["bm"].reshape(1, M).astype(jnp.float32)

    out_lane = time_block * M   # lane-dense output width per time block
    kernel = functools.partial(_lmn_kernel, time_block=time_block,
                               hidden=H, mem=M, bb=bb)

    out = pl.pallas_call(
        kernel,
        out_shape=jax.ShapeDtypeStruct((num_t_blocks, B, out_lane), x.dtype),
        grid_spec=pltpu.PrefetchScalarGridSpec(
            num_scalar_prefetch=0,
            grid=(B // bb, num_t_blocks),   # (parallel batch, sequential time)
            in_specs=[
                pl.BlockSpec((time_block, bb, H), lambda b, t: (t, b, 0)),  # xh block
                pl.BlockSpec((bb, M), lambda b, t: (b, 0)),                 # m0
                pl.BlockSpec((M, H + M), lambda b, t: (0, 0)),              # [Wmh^T|Wmm^T]
                pl.BlockSpec((H, M), lambda b, t: (0, 0)),                  # Whm^T
                pl.BlockSpec((1, M), lambda b, t: (0, 0)),                  # bm
            ],
            out_specs=pl.BlockSpec((1, bb, out_lane), lambda b, t: (t, b, 0)),
            scratch_shapes=[
                pltpu.VMEM((bb, M), jnp.float32),         # memory-state carry
                pltpu.VMEM((bb, out_lane), jnp.float32),  # lane-dense staging slab
            ],
        ),
        compiler_params=pltpu.CompilerParams(
            dimension_semantics=("parallel", "arbitrary"),  # time is sequential
        ),
    )(xh, m_prev.astype(jnp.float32), wm_cat, whm_t, bm)

    # Un-pack the lane-dense layout: (Tb, B, tt*M) -> (T, B, M).
    out = out.reshape(num_t_blocks, B, time_block, M)
    out = jnp.transpose(out, (0, 2, 1, 3)).reshape(T_pad, B, M)[:T]
    m_final = out[-1]
    return out, m_final


def lmn_layer_ref(x, m_prev, params):
    """Pure-JAX reference (mirrors the PyTorch forward)."""
    def step(m, xt):
        h = jnp.tanh(xt @ params["Wxh"].T + m @ params["Wmh"].T + params["bh"])
        m_new = h @ params["Whm"].T + m @ params["Wmm"].T + params["bm"]
        return m_new, m_new
    m_final, outs = jax.lax.scan(step, m_prev, x)
    return outs, m_final


def xavier_normal(key, shape, gain=0.9):
    fan_out, fan_in = shape
    std = gain * math.sqrt(2.0 / (fan_in + fan_out))
    return std * jax.random.normal(key, shape, dtype=jnp.float32)


def init_params(key, in_size, hidden_size, memory_size):
    ks = jax.random.split(key, 6)
    return {
        "Wxh": xavier_normal(ks[0], (hidden_size, in_size)),
        "Whm": xavier_normal(ks[1], (memory_size, hidden_size)),
        "Wmm": xavier_normal(ks[2], (memory_size, memory_size)),
        "Wmh": xavier_normal(ks[3], (hidden_size, memory_size)),
        "bh": jax.random.normal(ks[4], (hidden_size,), dtype=jnp.float32),
        "bm": jax.random.normal(ks[5], (memory_size,), dtype=jnp.float32),
    }


if __name__ == "__main__":
    # time_block=8 with M=16 gives lane-dense 128-wide output slabs and two
    # time blocks (T=16), exercising the VMEM state carry across grid steps.
    T, B, in_size, hidden_size, memory_size = 16, 2, 8, 32, 16
    time_block = 8

    key = jax.random.PRNGKey(0)
    k_params, k_x = jax.random.split(key)
    params = init_params(k_params, in_size, hidden_size, memory_size)

    x = jax.random.normal(k_x, (T, B, in_size), dtype=jnp.float32)
    m0 = jnp.zeros((B, memory_size), dtype=jnp.float32)  # init_hidden

    fwd = jax.jit(lmn_layer_forward,
                  static_argnames=("time_block", "batch_block", "weight_dtype"))
    out_states, m_final = fwd(x, m0, params, time_block=time_block)
    out_states = jax.block_until_ready(out_states)
    m_final = jax.block_until_ready(m_final)

    ref_states, ref_final = lmn_layer_ref(x, m0, params)
    assert out_states.shape == (T, B, memory_size)
    assert m_final.shape == (B, memory_size)
    assert jnp.allclose(out_states, ref_states, atol=1e-4, rtol=1e-4)
    assert jnp.allclose(m_final, ref_final, atol=1e-4, rtol=1e-4)

    print("KERNEL_OK")
</pallas_src>

<mosaic_0001>
module attributes {stable_mosaic.version = 11 : i64} {
  func.func @_lmn_kernel(%arg0: i32, %arg1: i32, %arg2: memref<8x2x32xf32, #tpu.memory_space<vmem>>, %arg3: memref<2x16xf32, #tpu.memory_space<vmem>>, %arg4: memref<16x48xf32, #tpu.memory_space<vmem>>, %arg5: memref<32x16xf32, #tpu.memory_space<vmem>>, %arg6: memref<1x16xf32, #tpu.memory_space<vmem>>, %arg7: memref<1x2x128xf32, #tpu.memory_space<vmem>>, %arg8: memref<2x16xf32, #tpu.memory_space<vmem>>, %arg9: memref<2x128xf32, #tpu.memory_space<vmem>>) attributes {dimension_semantics = [#tpu.dimension_semantics<parallel>, #tpu.dimension_semantics<arbitrary>], iteration_bounds = array<i64: 1, 2>, scalar_prefetch = 0 : i64, scratch_operands = 2 : i64, tpu.core_type = #tpu.core_type<tc>, window_params = [{transform_indices = @transform_0, window_bounds = array<i64: 8, 2, 32>}, {transform_indices = @transform_1, window_bounds = array<i64: 2, 16>}, {pipeline_mode = #tpu.pipeline_mode<synchronous>, transform_indices = @transform_2, window_bounds = array<i64: 16, 48>}, {pipeline_mode = #tpu.pipeline_mode<synchronous>, transform_indices = @transform_3, window_bounds = array<i64: 32, 16>}, {pipeline_mode = #tpu.pipeline_mode<synchronous>, transform_indices = @transform_4, window_bounds = array<i64: 1, 16>}, {transform_indices = @transform_5, window_bounds = array<i64: 1, 2, 128>}]} {
    %c0_i32 = arith.constant 0 : i32
    %0 = arith.cmpi eq, %arg1, %c0_i32 : i32
    %1 = arith.extui %0 : i1 to i32
    %c0_i32_0 = arith.constant 0 : i32
    %2 = arith.cmpi ne, %1, %c0_i32_0 : i32
    scf.if %2 {
      %c0_56 = arith.constant 0 : index
      %c0_57 = arith.constant 0 : index
      %102 = vector.load %arg3[%c0_56, %c0_57] : memref<2x16xf32, #tpu.memory_space<vmem>>, vector<2x16xf32>
      %c0_58 = arith.constant 0 : index
      %c0_59 = arith.constant 0 : index
      %103 = vector.load %arg8[%c0_58, %c0_59] : memref<2x16xf32, #tpu.memory_space<vmem>>, vector<2x16xf32>
      tpu.vector_store %arg8[%c0_58, %c0_59], %102 {strides = array<i32>} : memref<2x16xf32, #tpu.memory_space<vmem>>, vector<2x16xf32>,
    } else {
    }
    %c0 = arith.constant 0 : index
    %c0_1 = arith.constant 0 : index
    %3 = vector.load %arg8[%c0, %c0_1] : memref<2x16xf32, #tpu.memory_space<vmem>>, vector<2x16xf32>
    %c0_2 = arith.constant 0 : index
    %c0_3 = arith.constant 0 : index
    %4 = vector.load %arg4[%c0_2, %c0_3] : memref<16x48xf32, #tpu.memory_space<vmem>>, vector<16x48xf32>
    %c0_4 = arith.constant 0 : index
    %c0_5 = arith.constant 0 : index
    %5 = vector.load %arg5[%c0_4, %c0_5] : memref<32x16xf32, #tpu.memory_space<vmem>>, vector<32x16xf32>
    %c0_6 = arith.constant 0 : index
    %c0_7 = arith.constant 0 : index
    %6 = vector.load %arg6[%c0_6, %c0_7] : memref<1x16xf32, #tpu.memory_space<vmem>>, vector<1x16xf32>
    %7 = vector.shape_cast %6 : vector<1x16xf32> to vector<1x16xf32>
    %8 = vector.broadcast %7 : vector<1x16xf32> to vector<2x16xf32>
    %cst = arith.constant dense<0.000000e+00> : vector<2x48xf32>
    %9 = tpu.matmul %3, %4, %cst {dimension_numbers = #tpu.dot_dimension_numbers<[1], [0], [0], [1], [0, 0, 1, 1], [], []>} : vector<2x16xf32>, vector<16x48xf32>, vector<2x48xf32> -> vector<2x48xf32>
    %c0_8 = arith.constant 0 : index
    %c0_9 = arith.constant 0 : index
    %c0_10 = arith.constant 0 : index
    %10 = vector.load %arg2[%c0_8, %c0_9, %c0_10] : memref<8x2x32xf32, #tpu.memory_space<vmem>>, vector<1x2x32xf32>
    %11 = vector.shape_cast %10 : vector<1x2x32xf32> to vector<2x32xf32>
    %12 = vector.extract_strided_slice %9 {offsets = [0, 0], sizes = [2, 32], strides = [1, 1]} : vector<2x48xf32> to vector<2x32xf32>
    %13 = arith.addf %11, %12 : vector<2x32xf32>
    %14 = math.tanh %13 : vector<2x32xf32>
    %cst_11 = arith.constant dense<0.000000e+00> : vector<2x16xf32>
    %15 = tpu.matmul %14, %5, %cst_11 {dimension_numbers = #tpu.dot_dimension_numbers<[1], [0], [0], [1], [0, 0, 1, 1], [], []>} : vector<2x32xf32>, vector<32x16xf32>, vector<2x16xf32> -> vector<2x16xf32>
    %16 = vector.extract_strided_slice %9 {offsets = [0, 32], sizes = [2, 16], strides = [1, 1]} : vector<2x48xf32> to vector<2x16xf32>
    %17 = arith.addf %15, %16 : vector<2x16xf32>
    %18 = arith.addf %17, %8 : vector<2x16xf32>
    %c0_12 = arith.constant 0 : index
    %c0_13 = arith.constant 0 : index
    %19 = vector.load %arg9[%c0_12, %c0_13] : memref<2x128xf32, #tpu.memory_space<vmem>>, vector<2x16xf32>
    tpu.vector_store %arg9[%c0_12, %c0_13], %18 {strides = array<i32>} : memref<2x128xf32, #tpu.memory_space<vmem>>, vector<2x16xf32>,
    %cst_14 = arith.constant dense<0.000000e+00> : vector<2x48xf32>
    %20 = tpu.matmul %18, %4, %cst_14 {dimension_numbers = #tpu.dot_dimension_numbers<[1], [0], [0], [1], [0, 0, 1, 1], [], []>} : vector<2x16xf32>, vector<16x48xf32>, vector<2x48xf32> -> vector<2x48xf32>
    %c1 = arith.constant 1 : index
    %c0_15 = arith.constant 0 : index
    %c0_16 = arith.constant 0 : index
    %21 = vector.load %arg2[%c1, %c0_15, %c0_16] : memref<8x2x32xf32, #tpu.memory_space<vmem>>, vector<1x2x32xf32>
    %22 = vector.shape_cast %21 : vector<1x2x32xf32> to vector<2x32xf32>
    %23 = vector.extract_strided_slice %20 {offsets = [0, 0], sizes = [2, 32], strides = [1, 1]} : vector<2x48xf32> to vector<2x32xf32>
    %24 = arith.addf %22, %23 : vector<2x32xf32>
    %25 = math.tanh %24 : vector<2x32xf32>
    %cst_17 = arith.constant dense<0.000000e+00> : vector<2x16xf32>
    %26 = tpu.matmul %25, %5, %cst_17 {dimension_numbers = #tpu.dot_dimension_numbers<[1], [0], [0], [1], [0, 0, 1, 1], [], []>} : vector<2x32xf32>, vector<32x16xf32>, vector<2x16xf32> -> vector<2x16xf32>
    %27 = vector.extract_strided_slice %20 {offsets = [0, 32], sizes = [2, 16], strides = [1, 1]} : vector<2x48xf32> to vector<2x16xf32>
    %28 = arith.addf %26, %27 : vector<2x16xf32>
    %29 = arith.addf %28, %8 : vector<2x16xf32>
    %c0_18 = arith.constant 0 : index
    %c16 = arith.constant 16 : index
    %30 = vector.load %arg9[%c0_18, %c16] : memref<2x128xf32, #tpu.memory_space<vmem>>, vector<2x16xf32>
    tpu.vector_store %arg9[%c0_18, %c16], %29 {strides = array<i32>} : memref<2x128xf32, #tpu.memory_space<vmem>>, vector<2x16xf32>,
    %cst_19 = arith.constant dense<0.000000e+00> : vector<2x48xf32>
    %31 = tpu.matmul %29, %4, %cst_19 {dimension_numbers = #tpu.dot_dimension_numbers<[1], [0], [0], [1], [0, 0, 1, 1], [], []>} : vector<2x16xf32>, vector<16x48xf32>, vector<2x48xf32> -> vector<2x48xf32>
    %c2 = arith.constant 2 : index
    %c0_20 = arith.constant 0 : index
    %c0_21 = arith.constant 0 : index
    %32 = vector.load %arg2[%c2, %c0_20, %c0_21] : memref<8x2x32xf32, #tpu.memory_space<vmem>>, vector<1x2x32xf32>
    %33 = vector.shape_cast %32 : vector<1x2x32xf32> to vector<2x32xf32>
    %34 = vector.extract_strided_slice %31 {offsets = [0, 0], sizes = [2, 32], strides = [1, 1]} : vector<2x48xf32> to vector<2x32xf32>
    %35 = arith.addf %33, %34 : vector<2x32xf32>
    %36 = math.tanh %35 : vector<2x32xf32>
    %cst_22 = arith.constant dense<0.000000e+00> : vector<2x16xf32>
    %37 = tpu.matmul %36, %5, %cst_22 {dimension_numbers = #tpu.dot_dimension_numbers<[1], [0], [0], [1], [0, 0, 1, 1], [], []>} : vector<2x32xf32>, vector<32x16xf32>, vector<2x16xf32> -> vector<2x16xf32>
    %38 = vector.extract_strided_slice %31 {offsets = [0, 32], sizes = [2, 16], strides = [1, 1]} : vector<2x48xf32> to vector<2x16xf32>
    %39 = arith.addf %37, %38 : vector<2x16xf32>
    %40 = arith.addf %39, %8 : vector<2x16xf32>
    %c0_23 = arith.constant 0 : index
    %c32 = arith.constant 32 : index
    %41 = vector.load %arg9[%c0_23, %c32] : memref<2x128xf32, #tpu.memory_space<vmem>>, vector<2x16xf32>
    tpu.vector_store %arg9[%c0_23, %c32], %40 {strides = array<i32>} : memref<2x128xf32, #tpu.memory_space<vmem>>, vector<2x16xf32>,
    %cst_24 = arith.constant dense<0.000000e+00> : vector<2x48xf32>
    %42 = tpu.matmul %40, %4, %cst_24 {dimension_numbers = #tpu.dot_dimension_numbers<[1], [0], [0], [1], [0, 0, 1, 1], [], []>} : vector<2x16xf32>, vector<16x48xf32>, vector<2x48xf32> -> vector<2x48xf32>
    %c3 = arith.constant 3 : index
    %c0_25 = arith.constant 0 : index
    %c0_26 = arith.constant 0 : index
    %43 = vector.load %arg2[%c3, %c0_25, %c0_26] : memref<8x2x32xf32, #tpu.memory_space<vmem>>, vector<1x2x32xf32>
    %44 = vector.shape_cast %43 : vector<1x2x32xf32> to vector<2x32xf32>
    %45 = vector.extract_strided_slice %42 {offsets = [0, 0], sizes = [2, 32], strides = [1, 1]} : vector<2x48xf32> to vector<2x32xf32>
    %46 = arith.addf %44, %45 : vector<2x32xf32>
    %47 = math.tanh %46 : vector<2x32xf32>
    %cst_27 = arith.constant dense<0.000000e+00> : vector<2x16xf32>
    %48 = tpu.matmul %47, %5, %cst_27 {dimension_numbers = #tpu.dot_dimension_numbers<[1], [0], [0], [1], [0, 0, 1, 1], [], []>} : vector<2x32xf32>, vector<32x16xf32>, vector<2x16xf32> -> vector<2x16xf32>
    %49 = vector.extract_strided_slice %42 {offsets = [0, 32], sizes = [2, 16], strides = [1, 1]} : vector<2x48xf32> to vector<2x16xf32>
    %50 = arith.addf %48, %49 : vector<2x16xf32>
    %51 = arith.addf %50, %8 : vector<2x16xf32>
    %c0_28 = arith.constant 0 : index
    %c48 = arith.constant 48 : index
    %52 = vector.load %arg9[%c0_28, %c48] : memref<2x128xf32, #tpu.memory_space<vmem>>, vector<2x16xf32>
    tpu.vector_store %arg9[%c0_28, %c48], %51 {strides = array<i32>} : memref<2x128xf32, #tpu.memory_space<vmem>>, vector<2x16xf32>,
    %cst_29 = arith.constant dense<0.000000e+00> : vector<2x48xf32>
    %53 = tpu.matmul %51, %4, %cst_29 {dimension_numbers = #tpu.dot_dimension_numbers<[1], [0], [0], [1], [0, 0, 1, 1], [], []>} : vector<2x16xf32>, vector<16x48xf32>, vector<2x48xf32> -> vector<2x48xf32>
    %c4 = arith.constant 4 : index
    %c0_30 = arith.constant 0 : index
    %c0_31 = arith.constant 0 : index
    %54 = vector.load %arg2[%c4, %c0_30, %c0_31] : memref<8x2x32xf32, #tpu.memory_space<vmem>>, vector<1x2x32xf32>
    %55 = vector.shape_cast %54 : vector<1x2x32xf32> to vector<2x32xf32>
    %56 = vector.extract_strided_slice %53 {offsets = [0, 0], sizes = [2, 32], strides = [1, 1]} : vector<2x48xf32> to vector<2x32xf32>
    %57 = arith.addf %55, %56 : vector<2x32xf32>
    %58 = math.tanh %57 : vector<2x32xf32>
    %cst_32 = arith.constant dense<0.000000e+00> : vector<2x16xf32>
    %59 = tpu.matmul %58, %5, %cst_32 {dimension_numbers = #tpu.dot_dimension_numbers<[1], [0], [0], [1], [0, 0, 1, 1], [], []>} : vector<2x32xf32>, vector<32x16xf32>, vector<2x16xf32> -> vector<2x16xf32>
    %60 = vector.extract_strided_slice %53 {offsets = [0, 32], sizes = [2, 16], strides = [1, 1]} : vector<2x48xf32> to vector<2x16xf32>
    %61 = arith.addf %59, %60 : vector<2x16xf32>
    %62 = arith.addf %61, %8 : vector<2x16xf32>
    %c0_33 = arith.constant 0 : index
    %c64 = arith.constant 64 : index
    %63 = vector.load %arg9[%c0_33, %c64] : memref<2x128xf32, #tpu.memory_space<vmem>>, vector<2x16xf32>
    tpu.vector_store %arg9[%c0_33, %c64], %62 {strides = array<i32>} : memref<2x128xf32, #tpu.memory_space<vmem>>, vector<2x16xf32>,
    %cst_34 = arith.constant dense<0.000000e+00> : vector<2x48xf32>
    %64 = tpu.matmul %62, %4, %cst_34 {dimension_numbers = #tpu.dot_dimension_numbers<[1], [0], [0], [1], [0, 0, 1, 1], [], []>} : vector<2x16xf32>, vector<16x48xf32>, vector<2x48xf32> -> vector<2x48xf32>
    %c5 = arith.constant 5 : index
    %c0_35 = arith.constant 0 : index
    %c0_36 = arith.constant 0 : index
    %65 = vector.load %arg2[%c5, %c0_35, %c0_36] : memref<8x2x32xf32, #tpu.memory_space<vmem>>, vector<1x2x32xf32>
    %66 = vector.shape_cast %65 : vector<1x2x32xf32> to vector<2x32xf32>
    %67 = vector.extract_strided_slice %64 {offsets = [0, 0], sizes = [2, 32], strides = [1, 1]} : vector<2x48xf32> to vector<2x32xf32>
    %68 = arith.addf %66, %67 : vector<2x32xf32>
    %69 = math.tanh %68 : vector<2x32xf32>
    %cst_37 = arith.constant dense<0.000000e+00> : vector<2x16xf32>
    %70 = tpu.matmul %69, %5, %cst_37 {dimension_numbers = #tpu.dot_dimension_numbers<[1], [0], [0], [1], [0, 0, 1, 1], [], []>} : vector<2x32xf32>, vector<32x16xf32>, vector<2x16xf32> -> vector<2x16xf32>
    %71 = vector.extract_strided_slice %64 {offsets = [0, 32], sizes = [2, 16], strides = [1, 1]} : vector<2x48xf32> to vector<2x16xf32>
    %72 = arith.addf %70, %71 : vector<2x16xf32>
    %73 = arith.addf %72, %8 : vector<2x16xf32>
    %c0_38 = arith.constant 0 : index
    %c80 = arith.constant 80 : index
    %74 = vector.load %arg9[%c0_38, %c80] : memref<2x128xf32, #tpu.memory_space<vmem>>, vector<2x16xf32>
    tpu.vector_store %arg9[%c0_38, %c80], %73 {strides = array<i32>} : memref<2x128xf32, #tpu.memory_space<vmem>>, vector<2x16xf32>,
    %cst_39 = arith.constant dense<0.000000e+00> : vector<2x48xf32>
    %75 = tpu.matmul %73, %4, %cst_39 {dimension_numbers = #tpu.dot_dimension_numbers<[1], [0], [0], [1], [0, 0, 1, 1], [], []>} : vector<2x16xf32>, vector<16x48xf32>, vector<2x48xf32> -> vector<2x48xf32>
    %c6 = arith.constant 6 : index
    %c0_40 = arith.constant 0 : index
    %c0_41 = arith.constant 0 : index
    %76 = vector.load %arg2[%c6, %c0_40, %c0_41] : memref<8x2x32xf32, #tpu.memory_space<vmem>>, vector<1x2x32xf32>
    %77 = vector.shape_cast %76 : vector<1x2x32xf32> to vector<2x32xf32>
    %78 = vector.extract_strided_slice %75 {offsets = [0, 0], sizes = [2, 32], strides = [1, 1]} : vector<2x48xf32> to vector<2x32xf32>
    %79 = arith.addf %77, %78 : vector<2x32xf32>
    %80 = math.tanh %79 : vector<2x32xf32>
    %cst_42 = arith.constant dense<0.000000e+00> : vector<2x16xf32>
    %81 = tpu.matmul %80, %5, %cst_42 {dimension_numbers = #tpu.dot_dimension_numbers<[1], [0], [0], [1], [0, 0, 1, 1], [], []>} : vector<2x32xf32>, vector<32x16xf32>, vector<2x16xf32> -> vector<2x16xf32>
    %82 = vector.extract_strided_slice %75 {offsets = [0, 32], sizes = [2, 16], strides = [1, 1]} : vector<2x48xf32> to vector<2x16xf32>
    %83 = arith.addf %81, %82 : vector<2x16xf32>
    %84 = arith.addf %83, %8 : vector<2x16xf32>
    %c0_43 = arith.constant 0 : index
    %c96 = arith.constant 96 : index
    %85 = vector.load %arg9[%c0_43, %c96] : memref<2x128xf32, #tpu.memory_space<vmem>>, vector<2x16xf32>
    tpu.vector_store %arg9[%c0_43, %c96], %84 {strides = array<i32>} : memref<2x128xf32, #tpu.memory_space<vmem>>, vector<2x16xf32>,
    %cst_44 = arith.constant dense<0.000000e+00> : vector<2x48xf32>
    %86 = tpu.matmul %84, %4, %cst_44 {dimension_numbers = #tpu.dot_dimension_numbers<[1], [0], [0], [1], [0, 0, 1, 1], [], []>} : vector<2x16xf32>, vector<16x48xf32>, vector<2x48xf32> -> vector<2x48xf32>
    %c7 = arith.constant 7 : index
    %c0_45 = arith.constant 0 : index
    %c0_46 = arith.constant 0 : index
    %87 = vector.load %arg2[%c7, %c0_45, %c0_46] : memref<8x2x32xf32, #tpu.memory_space<vmem>>, vector<1x2x32xf32>
    %88 = vector.shape_cast %87 : vector<1x2x32xf32> to vector<2x32xf32>
    %89 = vector.extract_strided_slice %86 {offsets = [0, 0], sizes = [2, 32], strides = [1, 1]} : vector<2x48xf32> to vector<2x32xf32>
    %90 = arith.addf %88, %89 : vector<2x32xf32>
    %91 = math.tanh %90 : vector<2x32xf32>
    %cst_47 = arith.constant dense<0.000000e+00> : vector<2x16xf32>
    %92 = tpu.matmul %91, %5, %cst_47 {dimension_numbers = #tpu.dot_dimension_numbers<[1], [0], [0], [1], [0, 0, 1, 1], [], []>} : vector<2x32xf32>, vector<32x16xf32>, vector<2x16xf32> -> vector<2x16xf32>
    %93 = vector.extract_strided_slice %86 {offsets = [0, 32], sizes = [2, 16], strides = [1, 1]} : vector<2x48xf32> to vector<2x16xf32>
    %94 = arith.addf %92, %93 : vector<2x16xf32>
    %95 = arith.addf %94, %8 : vector<2x16xf32>
    %c0_48 = arith.constant 0 : index
    %c112 = arith.constant 112 : index
    %96 = vector.load %arg9[%c0_48, %c112] : memref<2x128xf32, #tpu.memory_space<vmem>>, vector<2x16xf32>
    tpu.vector_store %arg9[%c0_48, %c112], %95 {strides = array<i32>} : memref<2x128xf32, #tpu.memory_space<vmem>>, vector<2x16xf32>,
    %c0_49 = arith.constant 0 : index
    %c0_50 = arith.constant 0 : index
    %97 = vector.load %arg8[%c0_49, %c0_50] : memref<2x16xf32, #tpu.memory_space<vmem>>, vector<2x16xf32>
    tpu.vector_store %arg8[%c0_49, %c0_50], %95 {strides = array<i32>} : memref<2x16xf32, #tpu.memory_space<vmem>>, vector<2x16xf32>,
    %c0_51 = arith.constant 0 : index
    %c0_52 = arith.constant 0 : index
    %98 = vector.load %arg9[%c0_51, %c0_52] : memref<2x128xf32, #tpu.memory_space<vmem>>, vector<2x128xf32>
    %c0_53 = arith.constant 0 : index
    %c0_54 = arith.constant 0 : index
    %c0_55 = arith.constant 0 : index
    %99 = vector.load %arg7[%c0_53, %c0_54, %c0_55] : memref<1x2x128xf32, #tpu.memory_space<vmem>>, vector<1x2x128xf32>
    %100 = vector.shape_cast %99 : vector<1x2x128xf32> to vector<2x128xf32>
    %101 = vector.shape_cast %98 : vector<2x128xf32> to vector<1x2x128xf32>
    tpu.vector_store %arg7[%c0_53, %c0_54, %c0_55], %101 {strides = array<i32>} : memref<1x2x128xf32, #tpu.memory_space<vmem>>, vector<1x2x128xf32>,
    return
  }
  func.func @transform_0(%arg0: i32, %arg1: i32) -> (i32, i32, i32) {
    %c0_i32 = arith.constant 0 : i32
    %c0_i32_0 = arith.constant 0 : i32
    return %arg1, %arg0, %c0_i32 : i32, i32, i32
  }
  func.func @transform_1(%arg0: i32, %arg1: i32) -> (i32, i32) {
    %c0_i32 = arith.constant 0 : i32
    %c0_i32_0 = arith.constant 0 : i32
    return %arg0, %c0_i32 : i32, i32
  }
  func.func @transform_2(%arg0: i32, %arg1: i32) -> (i32, i32) {
    %c0_i32 = arith.constant 0 : i32
    %c0_i32_0 = arith.constant 0 : i32
    %c0_i32_1 = arith.constant 0 : i32
    return %c0_i32, %c0_i32_0 : i32, i32
  }
  func.func @transform_3(%arg0: i32, %arg1: i32) -> (i32, i32) {
    %c0_i32 = arith.constant 0 : i32
    %c0_i32_0 = arith.constant 0 : i32
    %c0_i32_1 = arith.constant 0 : i32
    return %c0_i32, %c0_i32_0 : i32, i32
  }
  func.func @transform_4(%arg0: i32, %arg1: i32) -> (i32, i32) {
    %c0_i32 = arith.constant 0 : i32
    %c0_i32_0 = arith.constant 0 : i32
    %c0_i32_1 = arith.constant 0 : i32
    return %c0_i32, %c0_i32_0 : i32, i32
  }
  func.func @transform_5(%arg0: i32, %arg1: i32) -> (i32, i32, i32) {
    %c0_i32 = arith.constant 0 : i32
    %c0_i32_0 = arith.constant 0 : i32
    return %arg1, %arg0, %c0_i32 : i32, i32, i32
  }
}

</mosaic_0001>

<llo_original>
// kernel: lmn_layer_forward.1
$region0: #{lmn_layer_forward.1}
  #allocation0 [shape = 'u32[]', space=smem, size = 0x4, offset = 0x4, fixed_abs, tag = 'smem constant byte address 0x4 - core index']
  #allocation1 [shape = 'u32[72,128]{1,0:T(1,128)}', space=vmem, size = 0x9000, scoped, tag = 'internal scratch']
  #allocation2 [shape = 'f32[2,16]{1,0:T(2,128)}', space=vmem, size = 0x400, scoped, tag = 'scratch operand']
  #allocation3 [shape = 'f32[2,128]{1,0:T(2,128)}', space=vmem, size = 0x400, scoped, tag = 'scratch operand']
  %s0 = inlined_call_operand.vmem [shape: f32[16,2,32], index: 0, kind: input, shape index: {}]
  %s1 = inlined_call_operand.vmem [shape: f32[2,16], index: 1, kind: input, shape index: {}]
  %s2 = inlined_call_operand.vmem [shape: f32[16,48], index: 2, kind: input, shape index: {}]
  %s3 = inlined_call_operand.vmem [shape: f32[32,16], index: 3, kind: input, shape index: {}]
  %s4 = inlined_call_operand.vmem [shape: f32[1,16], index: 4, kind: input, shape index: {}]
  %s5 = inlined_call_operand.vmem [shape: f32[2,2,128], index: 5, kind: output, shape index: {}]
  %s6 = sld [smem:[#allocation0]]
  $region57: #{lmn_layer_forward.1} parent=0
    _
  %s8 = ssub.s32 1, %s6
  %s9 = scalar_select 0, %s8, %s6
  loop: start=0, step=1, limit=4
  $region2: #{lmn_layer_forward.1} parent=0 // loop_pre_header
    _
  $region3: #{lmn_layer_forward.1} parent=0 // loop_header
    %s11 = sphi 0, %s15
    %p12 = scmp.ge.s32.totalorder %s11, 4
    %s18 = sphi 0, %s30
    %s19 = sphi 0, %s26
    %s20 = sphi 0, %s18
    %s21 = sphi 0, %s19
    %s22 = sphi 0, %s20
    %s23 = sphi 0, %s21
    %s35 = sphi 0, %s37
    %s38 = sphi 0, %s35
    %s39 = sphi 0, %s38
    %s55 = sphi 0, %s39
    %s61 = sphi 0, %s63
    %s64 = sphi 0, %s61
    %s65 = sphi 0, %s64
    %s81 = sphi 0, %s65
    %s85 = sphi 0, %s85
    %s87 = sphi 0, %s85
    %s88 = sphi 0, %s87
    %s102 = sphi 0, %s88
    %s106 = sphi 0, %s106
    %s108 = sphi 0, %s106
    %s109 = sphi 0, %s108
    %s123 = sphi 0, %s109
    %s127 = sphi 0, %s127
    %s129 = sphi 0, %s127
    %s130 = sphi 0, %s129
    %s144 = sphi 0, %s130
    %s152 = sphi 0, %s154
    %s155 = sphi 0, %s152
    %s156 = sphi 0, %s155
    %s172 = sphi 0, %s156
  $region4: #{lmn_layer_forward.1} parent=0 // loop_header_branch
    %14 = sbr.rel (%p12) target = $region8
  $region5: #{lmn_layer_forward.1} parent=0 // loop_body
    %s16 = ssub.s32 %s11, 1
    %s17 = ssub.s32 %s11, 2
    %s24 = sadd.s32 1, %s19
    %p25 = scmp.ge.s32.totalorder %s24, 2
    %s26 = scalar_select %p25, 0, %s24
    %s27 = sadd.s32 1, %s18
    %s28 = scalar_select %p25, %s27, %s18
    %p29 = scmp.ge.s32.totalorder %s28, 1
    %s30 = scalar_select %p29, 0, %s28
    %s31 = ssub.s32 %s19, %s26
    %s32 = ssub.s32 %s18, %s30
    %s33 = sor.u32 %s31, %s32
    %p34 = scmp.eq.s32.totalorder %s33, 0
    %s36 = sadd.s32 %s35, 1
    %s37 = scalar_select %p34, %s35, %s36
    %p40 = pneg %p34
    %p41 = scmp.eq.s32.totalorder %s11, 1
    %p42 = por %p40, %p41
    %p43 = scmp.ne.s32.totalorder %s35, %s38
    %p44 = scmp.eq.s32.totalorder %s11, 0
    %p45 = por %p43, %p44
    %p46 = scmp.ne.s32.totalorder %s35, %s38
    %p47 = scmp.eq.s32.totalorder %s16, 1
    %p48 = por %p46, %p47
    %p49 = scmp.ne.s32.totalorder %s38, %s39
    %p50 = scmp.eq.s32.totalorder %s16, 0
    %p51 = por %p49, %p50
    %p52 = scmp.ne.s32.totalorder %s38, %s39
    %p53 = scmp.eq.s32.totalorder %s17, 1
    %p54 = por %p52, %p53
    %p56 = scmp.ne.s32.totalorder %s39, %s55
    %p57 = scmp.eq.s32.totalorder %s17, 0
    %p58 = por %p56, %p57
    %s59 = ssub.s32 %s18, %s30
    %p60 = scmp.eq.s32.totalorder %s59, 0
    %s62 = sadd.s32 %s61, 1
    %s63 = scalar_select %p60, %s61, %s62
    %p66 = pneg %p60
    %p67 = scmp.eq.s32.totalorder %s11, 1
    %p68 = por %p66, %p67
    %p69 = scmp.ne.s32.totalorder %s61, %s64
    %p70 = scmp.eq.s32.totalorder %s11, 0
    %p71 = por %p69, %p70
    %p72 = scmp.ne.s32.totalorder %s61, %s64
    %p73 = scmp.eq.s32.totalorder %s16, 1
    %p74 = por %p72, %p73
    %p75 = scmp.ne.s32.totalorder %s64, %s65
    %p76 = scmp.eq.s32.totalorder %s16, 0
    %p77 = por %p75, %p76
    %p78 = scmp.ne.s32.totalorder %s64, %s65
    %p79 = scmp.eq.s32.totalorder %s17, 1
    %p80 = por %p78, %p79
    %p82 = scmp.ne.s32.totalorder %s65, %s81
    %p83 = scmp.eq.s32.totalorder %s17, 0
    %p84 = por %p82, %p83
    %s86 = sadd.s32 %s85, 1
    %p89 = scmp.eq.s32.totalorder %s11, 1
    %p90 = scmp.ne.s32.totalorder %s85, %s87
    %p91 = scmp.eq.s32.totalorder %s11, 0
    %p92 = por %p90, %p91
    %p93 = scmp.ne.s32.totalorder %s85, %s87
    %p94 = scmp.eq.s32.totalorder %s16, 1
    %p95 = por %p93, %p94
    %p96 = scmp.ne.s32.totalorder %s87, %s88
    %p97 = scmp.eq.s32.totalorder %s16, 0
    %p98 = por %p96, %p97
    %p99 = scmp.ne.s32.totalorder %s87, %s88
    %p100 = scmp.eq.s32.totalorder %s17, 1
    %p101 = por %p99, %p100
    %p103 = scmp.ne.s32.totalorder %s88, %s102
    %p104 = scmp.eq.s32.totalorder %s17, 0
    %p105 = por %p103, %p104
    %s107 = sadd.s32 %s106, 1
    %p110 = scmp.eq.s32.totalorder %s11, 1
    %p111 = scmp.ne.s32.totalorder %s106, %s108
    %p112 = scmp.eq.s32.totalorder %s11, 0
    %p113 = por %p111, %p112
    %p114 = scmp.ne.s32.totalorder %s106, %s108
    %p115 = scmp.eq.s32.totalorder %s16, 1
    %p116 = por %p114, %p115
    %p117 = scmp.ne.s32.totalorder %s108, %s109
    %p118 = scmp.eq.s32.totalorder %s16, 0
    %p119 = por %p117, %p118
    %p120 = scmp.ne.s32.totalorder %s108, %s109
    %p121 = scmp.eq.s32.totalorder %s17, 1
    %p122 = por %p120, %p121
    %p124 = scmp.ne.s32.totalorder %s109, %s123
    %p125 = scmp.eq.s32.totalorder %s17, 0
    %p126 = por %p124, %p125
    %s128 = sadd.s32 %s127, 1
    %p131 = scmp.eq.s32.totalorder %s11, 1
    %p132 = scmp.ne.s32.totalorder %s127, %s129
    %p133 = scmp.eq.s32.totalorder %s11, 0
    %p134 = por %p132, %p133
    %p135 = scmp.ne.s32.totalorder %s127, %s129
    %p136 = scmp.eq.s32.totalorder %s16, 1
    %p137 = por %p135, %p136
    %p138 = scmp.ne.s32.totalorder %s129, %s130
    %p139 = scmp.eq.s32.totalorder %s16, 0
    %p140 = por %p138, %p139
    %p141 = scmp.ne.s32.totalorder %s129, %s130
    %p142 = scmp.eq.s32.totalorder %s17, 1
    %p143 = por %p141, %p142
    %p145 = scmp.ne.s32.totalorder %s130, %s144
    %p146 = scmp.eq.s32.totalorder %s17, 0
    %p147 = por %p145, %p146
    %s148 = ssub.s32 %s19, %s26
    %s149 = ssub.s32 %s18, %s30
    %s150 = sor.u32 %s148, %s149
    %p151 = scmp.eq.s32.totalorder %s150, 0
    %s153 = sadd.s32 %s152, 1
    %s154 = scalar_select %p151, %s152, %s153
    %p157 = pneg %p151
    %p158 = scmp.eq.s32.totalorder %s11, 1
    %p159 = por %p157, %p158
    %p160 = scmp.ne.s32.totalorder %s152, %s155
    %p161 = scmp.eq.s32.totalorder %s11, 0
    %p162 = por %p160, %p161
    %p163 = scmp.ne.s32.totalorder %s152, %s155
    %p164 = scmp.eq.s32.totalorder %s16, 1
    %p165 = por %p163, %p164
    %p166 = scmp.ne.s32.totalorder %s155, %s156
    %p167 = scmp.eq.s32.totalorder %s16, 0
    %p168 = por %p166, %p167
    %p169 = scmp.ne.s32.totalorder %s155, %s156
    %p170 = scmp.eq.s32.totalorder %s17, 1
    %p171 = por %p169, %p170
    %p173 = scmp.ne.s32.totalorder %s156, %s172
    %p174 = scmp.eq.s32.totalorder %s17, 0
    %p175 = por %p173, %p174
    %p176 = scmp.le.s32.totalorder 1, %s11
    %p177 = scmp.lt.s32.totalorder %s11, 3
    %p178 = pnand %p176, %p177
    %p179 = pneg %p178
    // Predicated region
    $region9: #{lmn_layer_forward.1} parent=5 // pred_check
      _
    $region10: #{lmn_layer_forward.1} parent=5 // pred_check_branch
      %181 = sbr.rel (%p178) target = $region12
    $region11: #{lmn_layer_forward.1} parent=5 // pred_region
      %s182 = ssub.s32 %s11, 1
      // Predicated region
      $region13: #{lmn_layer_forward.1} parent=11 // pred_check
        %p183 = pneg %p77
      $region14: #{lmn_layer_forward.1} parent=11 // pred_check_branch
        %185 = sbr.rel (%p183) target = $region16
      $region15: #{lmn_layer_forward.1} parent=11 // pred_region
        %p186 = scmp.lt.s32.totalorder %s20, 0
        %s187 = scalar_select %p186, %s20, 0
        %s188 = smul.addr %s187, 2
        %s189 = scalar_lea.vmem %s1, %s188
      $region16: #{lmn_layer_forward.1} parent=11 // pred_fallthru
        _
      // Predicated region
      $region17: #{lmn_layer_forward.1} parent=11 // pred_check
        %p190 = pneg %p98
      $region18: #{lmn_layer_forward.1} parent=11 // pred_check_branch
        %192 = sbr.rel (%p190) target = $region20
      $region19: #{lmn_layer_forward.1} parent=11 // pred_region
        _
      $region20: #{lmn_layer_forward.1} parent=11 // pred_fallthru
        _
      // Predicated region
      $region21: #{lmn_layer_forward.1} parent=11 // pred_check
        %p193 = pneg %p119
      $region22: #{lmn_layer_forward.1} parent=11 // pred_check_branch
        %195 = sbr.rel (%p193) target = $region24
      $region23: #{lmn_layer_forward.1} parent=11 // pred_region
        _
      $region24: #{lmn_layer_forward.1} parent=11 // pred_fallthru
        _
      // Predicated region
      $region25: #{lmn_layer_forward.1} parent=11 // pred_check
        %p196 = pneg %p140
      $region26: #{lmn_layer_forward.1} parent=11 // pred_check_branch
        %198 = sbr.rel (%p196) target = $region28
      $region27: #{lmn_layer_forward.1} parent=11 // pred_region
        _
      $region28: #{lmn_layer_forward.1} parent=11 // pred_fallthru
        _
    $region12: #{lmn_layer_forward.1} parent=5 // pred_fallthru
      _
    %p199 = scmp.lt.s32.totalorder %s11, 2
    // Predicated region
    $region29: #{lmn_layer_forward.1} parent=5 // pred_check
      %p200 = pneg %p199
    $region30: #{lmn_layer_forward.1} parent=5 // pred_check_branch
      %202 = sbr.rel (%p200) target = $region32
    $region31: #{lmn_layer_forward.1} parent=5 // pred_region
      // Predicated region
      $region33: #{lmn_layer_forward.1} parent=31 // pred_check
        %p203 = pneg %p45
      $region34: #{lmn_layer_forward.1} parent=31 // pred_check_branch
        %205 = sbr.rel (%p203) target = $region36
      $region35: #{lmn_layer_forward.1} parent=31 // pred_region
        %s206 = smul.u32 8, %s19
        %p207 = scmp.lt.s32.totalorder %s206, 15
        %s208 = scalar_select %p207, %s206, 15
        %p209 = scmp.lt.s32.totalorder %s18, 0
        %s210 = scalar_select %p209, %s18, 0
        %s211 = sadd.s32 %s210, %s208
        %s212 = smul.addr %s211, 2
        %s213 = scalar_lea.vmem %s0, %s212
        %s214 = smul.u32 8, %s19
      $region36: #{lmn_layer_forward.1} parent=31 // pred_fallthru
        _
    $region32: #{lmn_layer_forward.1} parent=5 // pred_fallthru
      _
    %p215 = scmp.le.s32.totalorder 1, %s11
    %p216 = scmp.lt.s32.totalorder %s11, 3
    %p217 = pnand %p215, %p216
    %p218 = pneg %p217
    // Predicated region
    $region37: #{lmn_layer_forward.1} parent=5 // pred_check
      _
    $region38: #{lmn_layer_forward.1} parent=5 // pred_check_branch
      %220 = sbr.rel (%p217) target = $region40
    $region39: #{lmn_layer_forward.1} parent=5 // pred_region
      %s221 = ssub.s32 %s11, 1
      %s222 = smul.u32 8, %s21
      %p223 = scmp.lt.s32.totalorder %s222, 15
      %s224 = scalar_select %p223, %s222, 15
      %p225 = scmp.lt.s32.totalorder %s20, 0
      %s226 = scalar_select %p225, %s20, 0
      %s227 = sadd.s32 %s226, %s224
      %s228 = smul.addr %s227, 2
      %s229 = scalar_lea.vmem %s0, %s228
      %p230 = pneg %p51
      %p231 = pneg %p48
      %p232 = scmp.lt.s32.totalorder %s20, 0
      %s233 = scalar_select %p232, %s20, 0
      %s234 = smul.addr %s233, 2
      %s235 = scalar_lea.vmem %s1, %s234
      %p236 = pneg %p77
      %p237 = pneg %p74
      %p238 = pneg %p98
      %p239 = pneg %p95
      %p240 = pneg %p119
      %p241 = pneg %p116
      %p242 = pneg %p140
      %p243 = pneg %p137
      %p244 = pneg %p168
      %p245 = pneg %p165
      %p246 = scmp.lt.s32.totalorder %s21, 1
      %s247 = scalar_select %p246, %s21, 1
      %p248 = scmp.lt.s32.totalorder %s20, 0
      %s249 = scalar_select %p248, %s20, 0
      %s250 = sadd.s32 %s249, %s247
      %s251 = smul.addr %s250, 2
      %s252 = scalar_lea.vmem %s5, %s251
      %s253 = smul.u32 8, %s21
      %p254 = scmp.lt.s32.totalorder %s253, 15
      %s255 = scalar_select %p254, %s253, 15
      %p256 = scmp.lt.s32.totalorder %s20, 0
      %s257 = scalar_select %p256, %s20, 0
      %s258 = sadd.s32 %s257, %s255
      %s259 = smul.addr %s258, 2
      %s260 = scalar_lea.vmem %s0, %s259
      %s261 = smul.u32 8, %s21
      %p262 = scmp.lt.s32.totalorder %s20, 0
      %s263 = scalar_select %p262, %s20, 0
      %s264 = smul.addr %s263, 2
      %s265 = scalar_lea.vmem %s1, %s264
      %p266 = scmp.lt.s32.totalorder %s21, 1
      %s267 = scalar_select %p266, %s21, 1
      %p268 = scmp.lt.s32.totalorder %s20, 0
      %s269 = scalar_select %p268, %s20, 0
      %s270 = sadd.s32 %s269, %s267
      %s271 = smul.addr %s270, 2
      %s272 = scalar_lea.vmem %s5, %s271
      %p273 = scmp.eq.s32.totalorder %s21, 0
      // Predicated region
      $region41: #{lmn_layer_forward.1} parent=39 // pred_check
        %p274 = pneg %p273
      $region42: #{lmn_layer_forward.1} parent=39 // pred_check_branch
        %276 = sbr.rel (%p274) target = $region44
      $region43: #{lmn_layer_forward.1} parent=39 // pred_region
        %v277 = vld [vmem:[%s265] sm:$0x3]
        %vm278 = vcmask 123904
        %279 = vst.msk [vmem:[#allocation2] sm:$0x3] %vm278, %v277
      $region44: #{lmn_layer_forward.1} parent=39 // pred_fallthru
        _
      %v280 = vld [vmem:[#allocation2] sm:$0x3]
      %v281 = vld [vmem:[%s2] sm:$0xff]
      %v282 = vld [vmem:[%s2 + $0x8] sm:$0xff]
      %v283 = vld [vmem:[%s3] sm:$0xff]
      %v284 = vld [vmem:[%s3 + $0x8] sm:$0xff]
      %v285 = vld [vmem:[%s3 + $0x10] sm:$0xff]
      %v286 = vld [vmem:[%s3 + $0x18] sm:$0xff]
      %v287 = vld [vmem:[%s4] sm:$0x1]
      %v289 = vperm.slane %v287, 0
      %vm291 = vcmask 130048
      %v293 = vsel %vm291, %v280, 0
      %295 = vmatpush.msra.mxu0 0.0
      %296 = vmatpush.msra.mxu0 0.0
      %297 = vmatpush.msra.mxu0 0.0
      %298 = vmatpush.msra.mxu0 0.0
      %299 = vmatpush.msra.mxu0 0.0
      %300 = vmatpush.msra.mxu0 0.0
      %301 = vmatpush.msra.mxu0 0.0
      %302 = vmatpush.msra.mxu0 0.0
      %303 = vmatpush.msra.mxu0 0.0
      %304 = vmatpush.msra.mxu0 0.0
      %305 = vmatpush.msra.mxu0 0.0
      %306 = vmatpush.msra.mxu0 0.0
      %307 = vmatpush.msra.mxu0 0.0
      %308 = vmatpush.msra.mxu0 0.0
      %309 = vmatpush.msra.mxu0 %v282
      %310 = vmatpush.msra.mxu0 %v281
      %311 = vmatmul.f32.gmra.mxu0 %v293
      %v312 = vpop.f32.mrf.mxu0
      %v313 = vadd.f32 0.0, %v312
      %314 = vdwg.mxu0
      %v315 = vld [vmem:[%s260] sm:$0x3]
      %v316 = vadd.f32 %v315, %v313
      %v317 = vtanh.pop %v316
      %319 = vrot.lane.b32.xlu0 %v313, 96
      %v320 = vpop.permute.xlu0 %319
      %vm322 = vcmask 261120
      %v324 = vsel %vm322, %v317, 0
      %326 = vmatpush.msra.mxu0 0.0
      %327 = vmatpush.msra.mxu0 0.0
      %328 = vmatpush.msra.mxu0 0.0
      %329 = vmatpush.msra.mxu0 0.0
      %330 = vmatpush.msra.mxu0 0.0
      %331 = vmatpush.msra.mxu0 0.0
      %332 = vmatpush.msra.mxu0 0.0
      %333 = vmatpush.msra.mxu0 0.0
      %334 = vmatpush.msra.mxu0 0.0
      %335 = vmatpush.msra.mxu0 0.0
      %336 = vmatpush.msra.mxu0 0.0
      %337 = vmatpush.msra.mxu0 0.0
      %338 = vmatpush.msra.mxu0 %v286
      %339 = vmatpush.msra.mxu0 %v285
      %340 = vmatpush.msra.mxu0 %v284
      %341 = vmatpush.msra.mxu0 %v283
      %342 = vmatmul.f32.gmra.mxu0 %v324
      %v343 = vpop.f32.mrf.mxu0
      %v344 = vadd.f32 %v320, %v343
      %345 = vdwg.mxu0
      %v346 = vadd.f32 %v344, %v289
      %vm347 = vcmask 123904
      %348 = vst.msk [vmem:[#allocation3] sm:$0x3] %vm347, %v346
      %v350 = vsel %vm291, %v346, 0
      %352 = vmatpush.msra.mxu0 0.0
      %353 = vmatpush.msra.mxu0 0.0
      %354 = vmatpush.msra.mxu0 0.0
      %355 = vmatpush.msra.mxu0 0.0
      %356 = vmatpush.msra.mxu0 0.0
      %357 = vmatpush.msra.mxu0 0.0
      %358 = vmatpush.msra.mxu0 0.0
      %359 = vmatpush.msra.mxu0 0.0
      %360 = vmatpush.msra.mxu0 0.0
      %361 = vmatpush.msra.mxu0 0.0
      %362 = vmatpush.msra.mxu0 0.0
      %363 = vmatpush.msra.mxu0 0.0
      %364 = vmatpush.msra.mxu0 0.0
      %365 = vmatpush.msra.mxu0 0.0
      %366 = vmatpush.msra.mxu0 %v282
      %367 = vmatpush.msra.mxu0 %v281
      %368 = vmatmul.f32.gmra.mxu0 %v350
      %v369 = vpop.f32.mrf.mxu0
      %v370 = vadd.f32 0.0, %v369
      %371 = vdwg.mxu0
      %s372 = scalar_lea.vmem %s260, 2
      %v373 = vld [vmem:[%s372] sm:$0x3]
      %v374 = vadd.f32 %v373, %v370
      %v375 = vtanh.pop %v374
      %377 = vrot.lane.b32.xlu0 %v370, 96
      %v378 = vpop.permute.xlu0 %377
      %v381 = vsel %vm322, %v375, 0
      %383 = vmatpush.msra.mxu0 0.0
      %384 = vmatpush.msra.mxu0 0.0
      %385 = vmatpush.msra.mxu0 0.0
      %386 = vmatpush.msra.mxu0 0.0
      %387 = vmatpush.msra.mxu0 0.0
      %388 = vmatpush.msra.mxu0 0.0
      %389 = vmatpush.msra.mxu0 0.0
      %390 = vmatpush.msra.mxu0 0.0
      %391 = vmatpush.msra.mxu0 0.0
      %392 = vmatpush.msra.mxu0 0.0
      %393 = vmatpush.msra.mxu0 0.0
      %394 = vmatpush.msra.mxu0 0.0
      %395 = vmatpush.msra.mxu0 %v286
      %396 = vmatpush.msra.mxu0 %v285
      %397 = vmatpush.msra.mxu0 %v284
      %398 = vmatpush.msra.mxu0 %v283
      %399 = vmatmul.f32.gmra.mxu0 %v381
      %v400 = vpop.f32.mrf.mxu0
      %v401 = vadd.f32 %v378, %v400
      %402 = vdwg.mxu0
      %v403 = vadd.f32 %v401, %v289
      %405 = vrot.lane.b32.xlu0 %v403, 16
      %v406 = vpop.permute.xlu0 %405
      %vm408 = vcmask 255104
      %409 = vst.msk [vmem:[#allocation3] sm:$0x3] %vm408, %v406
      %v410 = vsel %vm291, %v403, 0
      %412 = vmatpush.msra.mxu0 0.0
      %413 = vmatpush.msra.mxu0 0.0
      %414 = vmatpush.msra.mxu0 0.0
      %415 = vmatpush.msra.mxu0 0.0
      %416 = vmatpush.msra.mxu0 0.0
      %417 = vmatpush.msra.mxu0 0.0
      %418 = vmatpush.msra.mxu0 0.0
      %419 = vmatpush.msra.mxu0 0.0
      %420 = vmatpush.msra.mxu0 0.0
      %421 = vmatpush.msra.mxu0 0.0
      %422 = vmatpush.msra.mxu0 0.0
      %423 = vmatpush.msra.mxu0 0.0
      %424 = vmatpush.msra.mxu0 0.0
      %425 = vmatpush.msra.mxu0 0.0
      %426 = vmatpush.msra.mxu0 %v282
      %427 = vmatpush.msra.mxu0 %v281
      %428 = vmatmul.f32.gmra.mxu0 %v410
      %v429 = vpop.f32.mrf.mxu0
      %v430 = vadd.f32 0.0, %v429
      %431 = vdwg.mxu0
      %s432 = scalar_lea.vmem %s260, 4
      %v433 = vld [vmem:[%s432] sm:$0x3]
      %v434 = vadd.f32 %v433, %v430
      %v435 = vtanh.pop %v434
      %437 = vrot.lane.b32.xlu0 %v430, 96
      %v438 = vpop.permute.xlu0 %437
      %v441 = vsel %vm322, %v435, 0
      %443 = vmatpush.msra.mxu0 0.0
      %444 = vmatpush.msra.mxu0 0.0
      %445 = vmatpush.msra.mxu0 0.0
      %446 = vmatpush.msra.mxu0 0.0
      %447 = vmatpush.msra.mxu0 0.0
      %448 = vmatpush.msra.mxu0 0.0
      %449 = vmatpush.msra.mxu0 0.0
      %450 = vmatpush.msra.mxu0 0.0
      %451 = vmatpush.msra.mxu0 0.0
      %452 = vmatpush.msra.mxu0 0.0
      %453 = vmatpush.msra.mxu0 0.0
      %454 = vmatpush.msra.mxu0 0.0
      %455 = vmatpush.msra.mxu0 %v286
      %456 = vmatpush.msra.mxu0 %v285
      %457 = vmatpush.msra.mxu0 %v284
      %458 = vmatpush.msra.mxu0 %v283
      %459 = vmatmul.f32.gmra.mxu0 %v441
      %v460 = vpop.f32.mrf.mxu0
      %v461 = vadd.f32 %v438, %v460
      %462 = vdwg.mxu0
      %v463 = vadd.f32 %v461, %v289
      %465 = vrot.lane.b32.xlu0 %v463, 32
      %v466 = vpop.permute.xlu0 %465
      %vm468 = vcmask 386304
      %469 = vst.msk [vmem:[#allocation3] sm:$0x3] %vm468, %v466
      %v470 = vsel %vm291, %v463, 0
      %472 = vmatpush.msra.mxu0 0.0
      %473 = vmatpush.msra.mxu0 0.0
      %474 = vmatpush.msra.mxu0 0.0
      %475 = vmatpush.msra.mxu0 0.0
      %476 = vmatpush.msra.mxu0 0.0
      %477 = vmatpush.msra.mxu0 0.0
      %478 = vmatpush.msra.mxu0 0.0
      %479 = vmatpush.msra.mxu0 0.0
      %480 = vmatpush.msra.mxu0 0.0
      %481 = vmatpush.msra.mxu0 0.0
      %482 = vmatpush.msra.mxu0 0.0
      %483 = vmatpush.msra.mxu0 0.0
      %484 = vmatpush.msra.mxu0 0.0
      %485 = vmatpush.msra.mxu0 0.0
      %486 = vmatpush.msra.mxu0 %v282
      %487 = vmatpush.msra.mxu0 %v281
      %488 = vmatmul.f32.gmra.mxu0 %v470
      %v489 = vpop.f32.mrf.mxu0
      %v490 = vadd.f32 0.0, %v489
      %491 = vdwg.mxu0
      %s492 = scalar_lea.vmem %s260, 6
      %v493 = vld [vmem:[%s492] sm:$0x3]
      %v494 = vadd.f32 %v493, %v490
      %v495 = vtanh.pop %v494
      %497 = vrot.lane.b32.xlu0 %v490, 96
      %v498 = vpop.permute.xlu0 %497
      %v501 = vsel %vm322, %v495, 0
      %503 = vmatpush.msra.mxu0 0.0
      %504 = vmatpush.msra.mxu0 0.0
      %505 = vmatpush.msra.mxu0 0.0
      %506 = vmatpush.msra.mxu0 0.0
      %507 = vmatpush.msra.mxu0 0.0
      %508 = vmatpush.msra.mxu0 0.0
      %509 = vmatpush.msra.mxu0 0.0
      %510 = vmatpush.msra.mxu0 0.0
      %511 = vmatpush.msra.mxu0 0.0
      %512 = vmatpush.msra.mxu0 0.0
      %513 = vmatpush.msra.mxu0 0.0
      %514 = vmatpush.msra.mxu0 0.0
      %515 = vmatpush.msra.mxu0 %v286
      %516 = vmatpush.msra.mxu0 %v285
      %517 = vmatpush.msra.mxu0 %v284
      %518 = vmatpush.msra.mxu0 %v283
      %519 = vmatmul.f32.gmra.mxu0 %v501
      %v520 = vpop.f32.mrf.mxu0
      %v521 = vadd.f32 %v498, %v520
      %522 = vdwg.mxu0
      %v523 = vadd.f32 %v521, %v289
      %525 = vrot.lane.b32.xlu0 %v523, 48
      %v526 = vpop.permute.xlu0 %525
      %vm528 = vcmask 517504
      %529 = vst.msk [vmem:[#allocation3] sm:$0x3] %vm528, %v526
      %v530 = vsel %vm291, %v523, 0
      %532 = vmatpush.msra.mxu0 0.0
      %533 = vmatpush.msra.mxu0 0.0
      %534 = vmatpush.msra.mxu0 0.0
      %535 = vmatpush.msra.mxu0 0.0
      %536 = vmatpush.msra.mxu0 0.0
      %537 = vmatpush.msra.mxu0 0.0
      %538 = vmatpush.msra.mxu0 0.0
      %539 = vmatpush.msra.mxu0 0.0
      %540 = vmatpush.msra.mxu0 0.0
      %541 = vmatpush.msra.mxu0 0.0
      %542 = vmatpush.msra.mxu0 0.0
      %543 = vmatpush.msra.mxu0 0.0
      %544 = vmatpush.msra.mxu0 0.0
      %545 = vmatpush.msra.mxu0 0.0
      %546 = vmatpush.msra.mxu0 %v282
      %547 = vmatpush.msra.mxu0 %v281
      %548 = vmatmul.f32.gmra.mxu0 %v530
      %v549 = vpop.f32.mrf.mxu0
      %v550 = vadd.f32 0.0, %v549
      %551 = vdwg.mxu0
      %s552 = scalar_lea.vmem %s260, 8
      %v553 = vld [vmem:[%s552] sm:$0x3]
      %v554 = vadd.f32 %v553, %v550
      %v555 = vtanh.pop %v554
      %557 = vrot.lane.b32.xlu0 %v550, 96
      %v558 = vpop.permute.xlu0 %557
      %v561 = vsel %vm322, %v555, 0
      %563 = vmatpush.msra.mxu0 0.0
      %564 = vmatpush.msra.mxu0 0.0
      %565 = vmatpush.msra.mxu0 0.0
      %566 = vmatpush.msra.mxu0 0.0
      %567 = vmatpush.msra.mxu0 0.0
      %568 = vmatpush.msra.mxu0 0.0
      %569 = vmatpush.msra.mxu0 0.0
      %570 = vmatpush.msra.mxu0 0.0
      %571 = vmatpush.msra.mxu0 0.0
      %572 = vmatpush.msra.mxu0 0.0
      %573 = vmatpush.msra.mxu0 0.0
      %574 = vmatpush.msra.mxu0 0.0
      %575 = vmatpush.msra.mxu0 %v286
      %576 = vmatpush.msra.mxu0 %v285
      %577 = vmatpush.msra.mxu0 %v284
      %578 = vmatpush.msra.mxu0 %v283
      %579 = vmatmul.f32.gmra.mxu0 %v561
      %v580 = vpop.f32.mrf.mxu0
      %v581 = vadd.f32 %v558, %v580
      %582 = vdwg.mxu0
      %v583 = vadd.f32 %v581, %v289
      %585 = vrot.lane.b32.xlu0 %v583, 64
      %v586 = vpop.permute.xlu0 %585
      %vm588 = vcmask 648704
      %589 = vst.msk [vmem:[#allocation3] sm:$0x3] %vm588, %v586
      %v590 = vsel %vm291, %v583, 0
      %592 = vmatpush.msra.mxu0 0.0
      %593 = vmatpush.msra.mxu0 0.0
      %594 = vmatpush.msra.mxu0 0.0
      %595 = vmatpush.msra.mxu0 0.0
      %596 = vmatpush.msra.mxu0 0.0
      %597 = vmatpush.msra.mxu0 0.0
      %598 = vmatpush.msra.mxu0 0.0
      %599 = vmatpush.msra.mxu0 0.0
      %600 = vmatpush.msra.mxu0 0.0
      %601 = vmatpush.msra.mxu0 0.0
      %602 = vmatpush.msra.mxu0 0.0
      %603 = vmatpush.msra.mxu0 0.0
      %604 = vmatpush.msra.mxu0 0.0
      %605 = vmatpush.msra.mxu0 0.0
      %606 = vmatpush.msra.mxu0 %v282
      %607 = vmatpush.msra.mxu0 %v281
      %608 = vmatmul.f32.gmra.mxu0 %v590
      %v609 = vpop.f32.mrf.mxu0
      %v610 = vadd.f32 0.0, %v609
      %611 = vdwg.mxu0
      %s612 = scalar_lea.vmem %s260, 10
      %v613 = vld [vmem:[%s612] sm:$0x3]
      %v614 = vadd.f32 %v613, %v610
      %v615 = vtanh.pop %v614
      %617 = vrot.lane.b32.xlu0 %v610, 96
      %v618 = vpop.permute.xlu0 %617
      %v621 = vsel %vm322, %v615, 0
      %623 = vmatpush.msra.mxu0 0.0
      %624 = vmatpush.msra.mxu0 0.0
      %625 = vmatpush.msra.mxu0 0.0
      %626 = vmatpush.msra.mxu0 0.0
      %627 = vmatpush.msra.mxu0 0.0
      %628 = vmatpush.msra.mxu0 0.0
      %629 = vmatpush.msra.mxu0 0.0
      %630 = vmatpush.msra.mxu0 0.0
      %631 = vmatpush.msra.mxu0 0.0
      %632 = vmatpush.msra.mxu0 0.0
      %633 = vmatpush.msra.mxu0 0.0
      %634 = vmatpush.msra.mxu0 0.0
      %635 = vmatpush.msra.mxu0 %v286
      %636 = vmatpush.msra.mxu0 %v285
      %637 = vmatpush.msra.mxu0 %v284
      %638 = vmatpush.msra.mxu0 %v283
      %639 = vmatmul.f32.gmra.mxu0 %v621
      %v640 = vpop.f32.mrf.mxu0
      %v641 = vadd.f32 %v618, %v640
      %642 = vdwg.mxu0
      %v643 = vadd.f32 %v641, %v289
      %645 = vrot.lane.b32.xlu0 %v643, 80
      %v646 = vpop.permute.xlu0 %645
      %vm648 = vcmask 779904
      %649 = vst.msk [vmem:[#allocation3] sm:$0x3] %vm648, %v646
      %v650 = vsel %vm291, %v643, 0
      %652 = vmatpush.msra.mxu0 0.0
      %653 = vmatpush.msra.mxu0 0.0
      %654 = vmatpush.msra.mxu0 0.0
      %655 = vmatpush.msra.mxu0 0.0
      %656 = vmatpush.msra.mxu0 0.0
      %657 = vmatpush.msra.mxu0 0.0
      %658 = vmatpush.msra.mxu0 0.0
      %659 = vmatpush.msra.mxu0 0.0
      %660 = vmatpush.msra.mxu0 0.0
      %661 = vmatpush.msra.mxu0 0.0
      %662 = vmatpush.msra.mxu0 0.0
      %663 = vmatpush.msra.mxu0 0.0
      %664 = vmatpush.msra.mxu0 0.0
      %665 = vmatpush.msra.mxu0 0.0
      %666 = vmatpush.msra.mxu0 %v282
      %667 = vmatpush.msra.mxu0 %v281
      %668 = vmatmul.f32.gmra.mxu0 %v650
      %v669 = vpop.f32.mrf.mxu0
      %v670 = vadd.f32 0.0, %v669
      %671 = vdwg.mxu0
      %s672 = scalar_lea.vmem %s260, 12
      %v673 = vld [vmem:[%s672] sm:$0x3]
      %v674 = vadd.f32 %v673, %v670
      %v675 = vtanh.pop %v674
      %677 = vrot.lane.b32.xlu0 %v670, 96
      %v678 = vpop.permute.xlu0 %677
      %v681 = vsel %vm322, %v675, 0
      %683 = vmatpush.msra.mxu0 0.0
      %684 = vmatpush.msra.mxu0 0.0
      %685 = vmatpush.msra.mxu0 0.0
      %686 = vmatpush.msra.mxu0 0.0
      %687 = vmatpush.msra.mxu0 0.0
      %688 = vmatpush.msra.mxu0 0.0
      %689 = vmatpush.msra.mxu0 0.0
      %690 = vmatpush.msra.mxu0 0.0
      %691 = vmatpush.msra.mxu0 0.0
      %692 = vmatpush.msra.mxu0 0.0
      %693 = vmatpush.msra.mxu0 0.0
      %694 = vmatpush.msra.mxu0 0.0
      %695 = vmatpush.msra.mxu0 %v286
      %696 = vmatpush.msra.mxu0 %v285
      %697 = vmatpush.msra.mxu0 %v284
      %698 = vmatpush.msra.mxu0 %v283
      %699 = vmatmul.f32.gmra.mxu0 %v681
      %v700 = vpop.f32.mrf.mxu0
      %v701 = vadd.f32 %v678, %v700
      %702 = vdwg.mxu0
      %v703 = vadd.f32 %v701, %v289
      %705 = vrot.lane.b32.xlu0 %v703, 96
      %v706 = vpop.permute.xlu0 %705
      %vm708 = vcmask 911104
      %709 = vst.msk [vmem:[#allocation3] sm:$0x3] %vm708, %v706
      %v710 = vsel %vm291, %v703, 0
      %712 = vmatpush.msra.mxu0 0.0
      %713 = vmatpush.msra.mxu0 0.0
      %714 = vmatpush.msra.mxu0 0.0
      %715 = vmatpush.msra.mxu0 0.0
      %716 = vmatpush.msra.mxu0 0.0
      %717 = vmatpush.msra.mxu0 0.0
      %718 = vmatpush.msra.mxu0 0.0
      %719 = vmatpush.msra.mxu0 0.0
      %720 = vmatpush.msra.mxu0 0.0
      %721 = vmatpush.msra.mxu0 0.0
      %722 = vmatpush.msra.mxu0 0.0
      %723 = vmatpush.msra.mxu0 0.0
      %724 = vmatpush.msra.mxu0 0.0
      %725 = vmatpush.msra.mxu0 0.0
      %726 = vmatpush.msra.mxu0 %v282
      %727 = vmatpush.msra.mxu0 %v281
      %728 = vmatmul.f32.gmra.mxu0 %v710
      %v729 = vpop.f32.mrf.mxu0
      %v730 = vadd.f32 0.0, %v729
      %731 = vdwg.mxu0
      %s732 = scalar_lea.vmem %s260, 14
      %v733 = vld [vmem:[%s732] sm:$0x3]
      %v734 = vadd.f32 %v733, %v730
      %v735 = vtanh.pop %v734
      %737 = vrot.lane.b32.xlu0 %v730, 96
      %v738 = vpop.permute.xlu0 %737
      %v741 = vsel %vm322, %v735, 0
      %743 = vmatpush.msra.mxu0 0.0
      %744 = vmatpush.msra.mxu0 0.0
      %745 = vmatpush.msra.mxu0 0.0
      %746 = vmatpush.msra.mxu0 0.0
      %747 = vmatpush.msra.mxu0 0.0
      %748 = vmatpush.msra.mxu0 0.0
      %749 = vmatpush.msra.mxu0 0.0
      %750 = vmatpush.msra.mxu0 0.0
      %751 = vmatpush.msra.mxu0 0.0
      %752 = vmatpush.msra.mxu0 0.0
      %753 = vmatpush.msra.mxu0 0.0
      %754 = vmatpush.msra.mxu0 0.0
      %755 = vmatpush.msra.mxu0 %v286
      %756 = vmatpush.msra.mxu0 %v285
      %757 = vmatpush.msra.mxu0 %v284
      %758 = vmatpush.msra.mxu0 %v283
      %759 = vmatmul.f32.gmra.mxu0 %v741
      %v760 = vpop.f32.mrf.mxu0
      %v761 = vadd.f32 %v738, %v760
      %762 = vdwg.mxu0
      %v763 = vadd.f32 %v761, %v289
      %765 = vrot.lane.b32.xlu0 %v763, 112
      %v766 = vpop.permute.xlu0 %765
      %vm768 = vcmask 1042304
      %769 = vst.msk [vmem:[#allocation3] sm:$0x3] %vm768, %v766
      %770 = vst.msk [vmem:[#allocation2] sm:$0x3] %vm347, %v763
      %v771 = vld [vmem:[#allocation3] sm:$0x3]
      %772 = vst [vmem:[%s272] sm:$0x3] %v771
      %p773 = scmp.lt.s32.totalorder %s21, 1
      %s774 = scalar_select %p773, %s21, 1
      %p775 = scmp.lt.s32.totalorder %s20, 0
      %s776 = scalar_select %p775, %s20, 0
      %s777 = sadd.s32 %s776, %s774
      %s778 = smul.addr %s777, 2
      %s779 = scalar_lea.vmem %s5, %s778
      // Predicated region
      $region45: #{lmn_layer_forward.1} parent=39 // pred_check
        %p780 = pneg %p165
      $region46: #{lmn_layer_forward.1} parent=39 // pred_check_branch
        %782 = sbr.rel (%p780) target = $region48
      $region47: #{lmn_layer_forward.1} parent=39 // pred_region
        _
      $region48: #{lmn_layer_forward.1} parent=39 // pred_fallthru
        _
    $region40: #{lmn_layer_forward.1} parent=5 // pred_fallthru
      _
    %p783 = scmp.le.s32.totalorder 2, %s11
    // Predicated region
    $region49: #{lmn_layer_forward.1} parent=5 // pred_check
      %p784 = pneg %p783
    $region50: #{lmn_layer_forward.1} parent=5 // pred_check_branch
      %786 = sbr.rel (%p784) target = $region52
    $region51: #{lmn_layer_forward.1} parent=5 // pred_region
      %s787 = ssub.s32 %s11, 2
      // Predicated region
      $region53: #{lmn_layer_forward.1} parent=51 // pred_check
        %p788 = pneg %p171
      $region54: #{lmn_layer_forward.1} parent=51 // pred_check_branch
        %790 = sbr.rel (%p788) target = $region56
      $region55: #{lmn_layer_forward.1} parent=51 // pred_region
        %p791 = scmp.lt.s32.totalorder %s23, 1
        %s792 = scalar_select %p791, %s23, 1
        %p793 = scmp.lt.s32.totalorder %s22, 0
        %s794 = scalar_select %p793, %s22, 0
        %s795 = sadd.s32 %s794, %s792
        %s796 = smul.addr %s795, 2
        %s797 = scalar_lea.vmem %s5, %s796
      $region56: #{lmn_layer_forward.1} parent=51 // pred_fallthru
        _
    $region52: #{lmn_layer_forward.1} parent=5 // pred_fallthru
      _
  $region6: #{lmn_layer_forward.1} parent=0 // loop_footer
    %s15 = sadd.s32 1, %s11
  $region7: #{lmn_layer_forward.1} parent=0 // loop_footer_branch
    %10 = sbr.rel target = $region3
  $region8: #{lmn_layer_forward.1} parent=0 // loop_exit
    _

</llo_original>
